<compile_context>
chip_gen: v7x
topology: tpu7x:2x2x1
jax: 0.10.0
libtpu: 0.0.40
codegen_flags: <defaults>
</compile_context>

<pallas_src>
import jax
import jax.numpy as jnp
from jax import lax
from jax.experimental import pallas as pl
from jax.experimental.pallas import tpu as pltpu

LN_EPS = 1e-5  # torch.nn.LayerNorm default
LANES = 128


def _cdiv(a, b):
    return -(-a // b)


def _round_up(n, m):
    return _cdiv(n, m) * m


def _pad_cols(a, cols):
    pad = cols - a.shape[-1]
    if pad == 0:
        return a
    return jnp.pad(a, [(0, 0)] * (a.ndim - 1) + [(0, pad)])


def _pad_rows_cols(w, rows, cols):
    pr, pc = rows - w.shape[0], cols - w.shape[1]
    if pr == 0 and pc == 0:
        return w
    return jnp.pad(w, ((0, pr), (0, pc)))


def _silu(x):
    return x * jax.nn.sigmoid(x)


def _param_spec(shape):
    """Full-block, grid-invariant parameter spec; single-buffered when supported."""
    idx = lambda i: (0, 0)
    if hasattr(pl, "Buffered"):
        try:
            return pl.BlockSpec(shape, idx, pipeline_mode=pl.Buffered(1))
        except TypeError:  # older Pallas without pipeline_mode kwarg
            pass
    return pl.BlockSpec(shape, idx)


def _make_action_encoder_kernel(ln_widths, n_sub, sub_rows):
    """Kernel for: Linear0, then len(ln_widths) x (LayerNorm, Linear, SiLU).

    Ref order: x, w0, b0, [gamma_i, beta_i, w_i, b_i]*num_blocks, out.
    ln_widths[i] is the *real* (unpadded) LayerNorm width of block i.
    """
    num_blocks = len(ln_widths)

    def kernel(*refs):
        x_ref = refs[0]
        o_ref = refs[-1]
        p = refs[1:-1]

        w0_ref = p[0]
        # Tiny per-step f32 casts of biases / LN affine params are hoisted;
        # weights are deliberately NOT hoisted (read at point of use to keep
        # vreg live ranges short across the unrolled sub-chunk loop).
        b0 = p[1][...].astype(jnp.float32)
        blk_params = []
        for i in range(num_blocks):
            gamma = p[2 + 4 * i][...].astype(jnp.float32)
            beta = p[3 + 4 * i][...].astype(jnp.float32)
            w_ref = p[4 + 4 * i]
            b = p[5 + 4 * i][...].astype(jnp.float32)
            blk_params.append((gamma, beta, w_ref, b))

        def compute(x_tile):
            # First Linear: MXU matmul with f32 accumulation.  Padded output
            # lanes of h are exactly 0 (zero-padded w0 cols / b0).
            w0 = w0_ref[...]  # load at point of use
            if x_tile.dtype != w0.dtype:
                x_tile = x_tile.astype(w0.dtype)
            h = jnp.dot(x_tile, w0, preferred_element_type=jnp.float32) + b0

            for i, (gamma, beta, w_ref, b) in enumerate(blk_params):
                inv_c = jnp.float32(1.0 / ln_widths[i])
                # One-pass LayerNorm statistics.  Padded lanes of h are exactly
                # zero, so plain lane-sums already equal the sums over the real
                # channels; no lane mask needed.
                mu = jnp.sum(h, axis=-1, keepdims=True) * inv_c
                ex2 = jnp.sum(h * h, axis=-1, keepdims=True) * inv_c
                var = jnp.maximum(ex2 - mu * mu, 0.0)
                hn = (h - mu) * lax.rsqrt(var + LN_EPS)
                # gamma/beta are zero-padded, so padded lanes are re-zeroed here.
                hn = hn * gamma + beta

                w = w_ref[...]  # load at point of use
                if hn.dtype != w.dtype:
                    hn = hn.astype(w.dtype)
                h = jnp.dot(hn, w, preferred_element_type=jnp.float32) + b
                h = _silu(h)  # silu(0) == 0 -> padded lanes (if any) stay 0
            return h

        if n_sub == 1:
            o_ref[...] = compute(x_ref[...]).astype(o_ref.dtype)
        else:
            # Sub-chunk the row tile so only sub_rows x width activations are
            # live at once; unrolled so the LLO scheduler can overlap MXU/XLU/
            # EUP/stores across sub-chunks.
            def body(s, carry):
                r0 = pl.multiple_of(s * sub_rows, sub_rows)
                xs = x_ref[pl.ds(r0, sub_rows), :]
                o_ref[pl.ds(r0, sub_rows), :] = compute(xs).astype(o_ref.dtype)
                return carry

            lax.fori_loop(0, n_sub, body, 0, unroll=True)

    return kernel


def action_encoder_forward(
    x,
    params,
    *,
    tile_rows=1024,
    sub_rows=128,
    min_steps=4,
    vmem_limit_bytes=None,
):
    """Run the fused ActionEncoder forward.

    x: (B, S, in_channels)  -- pass bf16 to halve HBM traffic (matmul accum,
       LN stats and SiLU still run in f32); the output matches x.dtype.
    params: dict with 'w0', 'b0', and lists 'gamma', 'beta', 'w', 'b'.
    Returns: (B, S, ch[-1])
    """
    B, S, in_ch = x.shape
    num_blocks = len(params["w"])
    ln_widths = [int(params["gamma"][i].shape[0]) for i in range(num_blocks)]
    out_ch = int(params["w"][-1].shape[1]) if num_blocks else int(params["w0"].shape[1])

    # Widths of every Linear output.  Pad to 128 lanes only where a LayerNorm
    # follows (lane-dense intermediates); the final output stays UNPADDED so
    # no dead HBM write bytes and no post-kernel channel slice.
    widths = [int(params["w0"].shape[1])] + [int(params["w"][i].shape[1]) for i in range(num_blocks)]
    pads = [_round_up(w, LANES) if i < num_blocks else w for i, w in enumerate(widths)]

    # Row tiling: derive the tile from the row count so padding is at most a
    # few sublanes, keep >= min_steps grid steps (v7x 2-TC split), cap tiles at
    # tile_rows to amortize per-step overhead.
    rows = B * S
    rows8 = _round_up(rows, 8)
    n_steps = max(min_steps, _cdiv(rows8, max(tile_rows, 8)))
    tile = max(_round_up(_cdiv(rows8, n_steps), 8), 8)
    grid_steps = _cdiv(rows, tile)
    rows_padded = grid_steps * tile

    sub = sub_rows if (tile > sub_rows and tile % sub_rows == 0) else tile
    n_sub = tile // sub

    x2d = x.reshape(rows, in_ch)
    if rows_padded != rows:
        x2d = jnp.pad(x2d, ((0, rows_padded - rows), (0, 0)))

    # Operand list: x, w0, b0, [gamma, beta, w, b]*num_blocks (channel-padded
    # only where they feed a LayerNorm; the last Linear's cols/bias are real).
    operands = [
        x2d,
        _pad_rows_cols(params["w0"], in_ch, pads[0]),
        _pad_cols(params["b0"].reshape(1, -1), pads[0]),
    ]
    for i in range(num_blocks):
        cin_pad, cout_pad = pads[i], pads[i + 1]
        operands.append(_pad_cols(params["gamma"][i].reshape(1, -1), cin_pad))
        operands.append(_pad_cols(params["beta"][i].reshape(1, -1), cin_pad))
        operands.append(_pad_rows_cols(params["w"][i], cin_pad, cout_pad))
        operands.append(_pad_cols(params["b"][i].reshape(1, -1), cout_pad))

    grid = (grid_steps,)

    # x is tiled over rows; parameters are full, grid-invariant blocks.
    in_specs = [pl.BlockSpec((tile, in_ch), lambda i: (i, 0))]
    for op in operands[1:]:
        in_specs.append(_param_spec(op.shape))
    out_spec = pl.BlockSpec((tile, out_ch), lambda i: (i, 0))

    kernel = _make_action_encoder_kernel(ln_widths, n_sub, sub)

    cp_kwargs = dict(dimension_semantics=("parallel",))
    if vmem_limit_bytes is not None:
        cp_kwargs["vmem_limit_bytes"] = vmem_limit_bytes

    out2d = pl.pallas_call(
        kernel,
        out_shape=jax.ShapeDtypeStruct((rows_padded, out_ch), x.dtype),
        grid_spec=pl.GridSpec(
            grid=grid,
            in_specs=in_specs,
            out_specs=out_spec,
        ),
        compiler_params=pltpu.CompilerParams(**cp_kwargs),
    )(*operands)

    if rows_padded != rows:
        out2d = out2d[:rows]
    return out2d.reshape(B, S, out_ch)


def init_action_encoder_params(key, in_channels, ch):
    """Deterministic synthetic parameter init matching nn.Linear / nn.LayerNorm shapes."""
    params = {}
    k0, key = jax.random.split(key)
    params["w0"] = (
        jax.random.normal(k0, (in_channels, ch[0]), jnp.float32)
        / jnp.sqrt(jnp.float32(in_channels))
    )
    kb, key = jax.random.split(key)
    params["b0"] = 0.01 * jax.random.normal(kb, (ch[0],), jnp.float32)

    params["gamma"], params["beta"], params["w"], params["b"] = [], [], [], []
    for i in range(len(ch) - 1):
        params["gamma"].append(jnp.ones((ch[i],), jnp.float32))
        params["beta"].append(jnp.zeros((ch[i],), jnp.float32))
        kw, key = jax.random.split(key)
        params["w"].append(
            jax.random.normal(kw, (ch[i], ch[i + 1]), jnp.float32)
            / jnp.sqrt(jnp.float32(ch[i]))
        )
        kb2, key = jax.random.split(key)
        params["b"].append(0.01 * jax.random.normal(kb2, (ch[i + 1],), jnp.float32))
    return params


def action_encoder_ref(x, params):
    """Pure-JAX reference mirroring the PyTorch forward."""
    h = x @ params["w0"] + params["b0"]
    for i in range(len(params["w"])):
        mu = jnp.mean(h, axis=-1, keepdims=True)
        var = jnp.mean(jnp.square(h - mu), axis=-1, keepdims=True)
        hn = (h - mu) / jnp.sqrt(var + LN_EPS)
        hn = hn * params["gamma"][i] + params["beta"][i]
        h = hn @ params["w"][i] + params["b"][i]
        h = _silu(h)
    return h


if __name__ == "__main__":
    key = jax.random.PRNGKey(0)
    ks = jax.random.split(key, 6)

    def run_case(B, S, in_channels, ch, kx, kp, x_dtype=jnp.float32, atol=1e-3, rtol=1e-3):
        x = jax.random.normal(kx, (B, S, in_channels), jnp.float32).astype(x_dtype)
        params = init_action_encoder_params(kp, in_channels, ch)
        out = jax.block_until_ready(action_encoder_forward(x, params))
        ref = action_encoder_ref(x.astype(jnp.float32), params)
        assert out.shape == ref.shape, (out.shape, ref.shape)
        assert out.dtype == x_dtype, (out.dtype, x_dtype)
        out_f = out.astype(jnp.float32)
        err = float(jnp.max(jnp.abs(out_f - ref)))
        assert jnp.allclose(out_f, ref, atol=atol, rtol=rtol), err
        return err

    # Small shapes consistent with the module: batch=2, seq=8, in_channels=16, ch=(32, 64).
    run_case(2, 8, 16, (32, 64), ks[0], ks[1])
    # Larger case exercising multiple grid steps, small row padding, channel-pad
    # handling (96 -> 128) and the unrolled sub-chunk loop.
    run_case(4, 250, 16, (96, 64), ks[2], ks[3])
    # bf16 I/O path (halves HBM bytes on this mem-bound kernel); looser tolerance
    # for the final bf16 downcast of the output.
    run_case(2, 128, 16, (32, 64), ks[4], ks[5], x_dtype=jnp.bfloat16, atol=3e-2, rtol=3e-2)

    print("KERNEL_OK")
</pallas_src>

<mosaic_0001>
module attributes {stable_mosaic.version = 11 : i64} {
  func.func @kernel(%arg0: i32, %arg1: memref<8x16xf32, #tpu.memory_space<vmem>>, %arg2: memref<16x128xf32, #tpu.memory_space<vmem>>, %arg3: memref<1x128xf32, #tpu.memory_space<vmem>>, %arg4: memref<1x128xf32, #tpu.memory_space<vmem>>, %arg5: memref<1x128xf32, #tpu.memory_space<vmem>>, %arg6: memref<128x64xf32, #tpu.memory_space<vmem>>, %arg7: memref<1x64xf32, #tpu.memory_space<vmem>>, %arg8: memref<8x64xf32, #tpu.memory_space<vmem>>) attributes {dimension_semantics = [#tpu.dimension_semantics<parallel>], iteration_bounds = array<i64: 2>, scalar_prefetch = 0 : i64, scratch_operands = 0 : i64, tpu.core_type = #tpu.core_type<tc>, window_params = [{transform_indices = @transform_0, window_bounds = array<i64: 8, 16>}, {pipeline_mode = #tpu.pipeline_mode<synchronous>, transform_indices = @transform_1, window_bounds = array<i64: 16, 128>}, {pipeline_mode = #tpu.pipeline_mode<synchronous>, transform_indices = @transform_2, window_bounds = array<i64: 1, 128>}, {pipeline_mode = #tpu.pipeline_mode<synchronous>, transform_indices = @transform_3, window_bounds = array<i64: 1, 128>}, {pipeline_mode = #tpu.pipeline_mode<synchronous>, transform_indices = @transform_4, window_bounds = array<i64: 1, 128>}, {pipeline_mode = #tpu.pipeline_mode<synchronous>, transform_indices = @transform_5, window_bounds = array<i64: 128, 64>}, {pipeline_mode = #tpu.pipeline_mode<synchronous>, transform_indices = @transform_6, window_bounds = array<i64: 1, 64>}, {transform_indices = @transform_7, window_bounds = array<i64: 8, 64>}]} {
    %c0 = arith.constant 0 : index
    %c0_0 = arith.constant 0 : index
    %0 = vector.load %arg3[%c0, %c0_0] : memref<1x128xf32, #tpu.memory_space<vmem>>, vector<1x128xf32>
    %c0_1 = arith.constant 0 : index
    %c0_2 = arith.constant 0 : index
    %1 = vector.load %arg4[%c0_1, %c0_2] : memref<1x128xf32, #tpu.memory_space<vmem>>, vector<1x128xf32>
    %c0_3 = arith.constant 0 : index
    %c0_4 = arith.constant 0 : index
    %2 = vector.load %arg5[%c0_3, %c0_4] : memref<1x128xf32, #tpu.memory_space<vmem>>, vector<1x128xf32>
    %c0_5 = arith.constant 0 : index
    %c0_6 = arith.constant 0 : index
    %3 = vector.load %arg7[%c0_5, %c0_6] : memref<1x64xf32, #tpu.memory_space<vmem>>, vector<1x64xf32>
    %c0_7 = arith.constant 0 : index
    %c0_8 = arith.constant 0 : index
    %4 = vector.load %arg1[%c0_7, %c0_8] : memref<8x16xf32, #tpu.memory_space<vmem>>, vector<8x16xf32>
    %c0_9 = arith.constant 0 : index
    %c0_10 = arith.constant 0 : index
    %5 = vector.load %arg2[%c0_9, %c0_10] : memref<16x128xf32, #tpu.memory_space<vmem>>, vector<16x128xf32>
    %cst = arith.constant dense<0.000000e+00> : vector<8x128xf32>
    %6 = tpu.matmul %4, %5, %cst {dimension_numbers = #tpu.dot_dimension_numbers<[1], [0], [0], [1], [0, 0, 1, 1], [], []>} : vector<8x16xf32>, vector<16x128xf32>, vector<8x128xf32> -> vector<8x128xf32>
    %7 = vector.broadcast %0 : vector<1x128xf32> to vector<8x128xf32>
    %8 = arith.addf %6, %7 : vector<8x128xf32>
    %cst_11 = arith.constant dense<0.000000e+00> : vector<8xf32>
    %9 = vector.multi_reduction <add>, %8, %cst_11 [1] : vector<8x128xf32> to vector<8xf32>
    %10 = vector.shape_cast %9 : vector<8xf32> to vector<8x1xf32>
    %cst_12 = arith.constant 3.125000e-02 : f32
    %11 = vector.broadcast %cst_12 : f32 to vector<8x1xf32>
    %12 = arith.mulf %10, %11 : vector<8x1xf32>
    %13 = arith.mulf %8, %8 : vector<8x128xf32>
    %cst_13 = arith.constant dense<0.000000e+00> : vector<8xf32>
    %14 = vector.multi_reduction <add>, %13, %cst_13 [1] : vector<8x128xf32> to vector<8xf32>
    %15 = vector.shape_cast %14 : vector<8xf32> to vector<8x1xf32>
    %cst_14 = arith.constant 3.125000e-02 : f32
    %16 = vector.broadcast %cst_14 : f32 to vector<8x1xf32>
    %17 = arith.mulf %15, %16 : vector<8x1xf32>
    %18 = arith.mulf %12, %12 : vector<8x1xf32>
    %19 = arith.subf %17, %18 : vector<8x1xf32>
    %cst_15 = arith.constant 0.000000e+00 : f32
    %20 = vector.broadcast %cst_15 : f32 to vector<8x1xf32>
    %21 = arith.maximumf %19, %20 : vector<8x1xf32>
    %22 = vector.broadcast %12 : vector<8x1xf32> to vector<8x128xf32>
    %23 = arith.subf %8, %22 : vector<8x128xf32>
    %cst_16 = arith.constant 9.99999974E-6 : f32
    %24 = vector.broadcast %cst_16 : f32 to vector<8x1xf32>
    %25 = arith.addf %21, %24 : vector<8x1xf32>
    %26 = math.rsqrt %25 : vector<8x1xf32>
    %27 = vector.broadcast %26 : vector<8x1xf32> to vector<8x128xf32>
    %28 = arith.mulf %23, %27 : vector<8x128xf32>
    %29 = vector.broadcast %1 : vector<1x128xf32> to vector<8x128xf32>
    %30 = arith.mulf %28, %29 : vector<8x128xf32>
    %31 = vector.broadcast %2 : vector<1x128xf32> to vector<8x128xf32>
    %32 = arith.addf %30, %31 : vector<8x128xf32>
    %c0_17 = arith.constant 0 : index
    %c0_18 = arith.constant 0 : index
    %33 = vector.load %arg6[%c0_17, %c0_18] : memref<128x64xf32, #tpu.memory_space<vmem>>, vector<128x64xf32>
    %cst_19 = arith.constant dense<0.000000e+00> : vector<8x64xf32>
    %34 = tpu.matmul %32, %33, %cst_19 {dimension_numbers = #tpu.dot_dimension_numbers<[1], [0], [0], [1], [0, 0, 1, 1], [], []>} : vector<8x128xf32>, vector<128x64xf32>, vector<8x64xf32> -> vector<8x64xf32>
    %35 = vector.broadcast %3 : vector<1x64xf32> to vector<8x64xf32>
    %36 = arith.addf %34, %35 : vector<8x64xf32>
    %37 = arith.negf %36 : vector<8x64xf32>
    %38 = math.exp %37 : vector<8x64xf32>
    %cst_20 = arith.constant 1.000000e+00 : f32
    %39 = vector.broadcast %cst_20 : f32 to vector<8x64xf32>
    %40 = arith.addf %39, %38 : vector<8x64xf32>
    %41 = arith.divf %39, %40 : vector<8x64xf32>
    %42 = arith.mulf %36, %41 : vector<8x64xf32>
    %c0_21 = arith.constant 0 : index
    %c0_22 = arith.constant 0 : index
    %43 = vector.load %arg8[%c0_21, %c0_22] : memref<8x64xf32, #tpu.memory_space<vmem>>, vector<8x64xf32>
    tpu.vector_store %arg8[%c0_21, %c0_22], %42 {strides = array<i32>} : memref<8x64xf32, #tpu.memory_space<vmem>>, vector<8x64xf32>,
    return
  }
  func.func @transform_0(%arg0: i32) -> (i32, i32) {
    %c0_i32 = arith.constant 0 : i32
    %c0_i32_0 = arith.constant 0 : i32
    return %arg0, %c0_i32 : i32, i32
  }
  func.func @transform_1(%arg0: i32) -> (i32, i32) {
    %c0_i32 = arith.constant 0 : i32
    %c0_i32_0 = arith.constant 0 : i32
    %c0_i32_1 = arith.constant 0 : i32
    return %c0_i32, %c0_i32_0 : i32, i32
  }
  func.func @transform_2(%arg0: i32) -> (i32, i32) {
    %c0_i32 = arith.constant 0 : i32
    %c0_i32_0 = arith.constant 0 : i32
    %c0_i32_1 = arith.constant 0 : i32
    return %c0_i32, %c0_i32_0 : i32, i32
  }
  func.func @transform_3(%arg0: i32) -> (i32, i32) {
    %c0_i32 = arith.constant 0 : i32
    %c0_i32_0 = arith.constant 0 : i32
    %c0_i32_1 = arith.constant 0 : i32
    return %c0_i32, %c0_i32_0 : i32, i32
  }
  func.func @transform_4(%arg0: i32) -> (i32, i32) {
    %c0_i32 = arith.constant 0 : i32
    %c0_i32_0 = arith.constant 0 : i32
    %c0_i32_1 = arith.constant 0 : i32
    return %c0_i32, %c0_i32_0 : i32, i32
  }
  func.func @transform_5(%arg0: i32) -> (i32, i32) {
    %c0_i32 = arith.constant 0 : i32
    %c0_i32_0 = arith.constant 0 : i32
    %c0_i32_1 = arith.constant 0 : i32
    return %c0_i32, %c0_i32_0 : i32, i32
  }
  func.func @transform_6(%arg0: i32) -> (i32, i32) {
    %c0_i32 = arith.constant 0 : i32
    %c0_i32_0 = arith.constant 0 : i32
    %c0_i32_1 = arith.constant 0 : i32
    return %c0_i32, %c0_i32_0 : i32, i32
  }
  func.func @transform_7(%arg0: i32) -> (i32, i32) {
    %c0_i32 = arith.constant 0 : i32
    %c0_i32_0 = arith.constant 0 : i32
    return %arg0, %c0_i32 : i32, i32
  }
}

</mosaic_0001>

<llo_original>
// kernel: tpu_custom_call.1
$region0: #{tpu_custom_call.1}
  #allocation0 [shape = 'u32[]', space=smem, size = 0x4, offset = 0x4, fixed_abs, tag = 'smem constant byte address 0x4 - core index']
  #allocation1 [shape = 'u32[144,128]{1,0:T(1,128)}', space=vmem, size = 0x12000, scoped, tag = 'internal scratch']
  %s0 = inlined_call_operand.vmem [shape: f32[16,16], index: 0, kind: input, shape index: {}]
  %s1 = inlined_call_operand.vmem [shape: f32[16,128], index: 1, kind: input, shape index: {}]
  %s2 = inlined_call_operand.vmem [shape: f32[1,128], index: 2, kind: input, shape index: {}]
  %s3 = inlined_call_operand.vmem [shape: f32[1,128], index: 3, kind: input, shape index: {}]
  %s4 = inlined_call_operand.vmem [shape: f32[1,128], index: 4, kind: input, shape index: {}]
  %s5 = inlined_call_operand.vmem [shape: f32[128,64], index: 5, kind: input, shape index: {}]
  %s6 = inlined_call_operand.vmem [shape: f32[1,64], index: 6, kind: input, shape index: {}]
  %s7 = inlined_call_operand.hbm [shape: f32[16,64], index: 7, kind: output, shape index: {}]
  %s8 = sld [smem:[#allocation0]]
  $region61: #{tpu_custom_call.1} parent=0
    _
  %s10 = ssub.s32 1, %s8
  %s11 = scalar_select 0, %s10, %s8
  $region1: #{tpu_custom_call.1} parent=0
    #allocation2 [shape = 'u8[8192]{0}', space=vmem, size = 0x2000, scoped, tag = 'output window, operand 0']
    #allocation3 [shape = 's32[2]{0}', space=sflag, size = 0x8, scoped, tag = 'scoped memory for tpu_custom_call.1']
    %12 = vsyncpa [#allocation3], 0
    %s13 = scalar_lea.sflag [#allocation3], 1
    %14 = vsyncpa %s13, 0
    loop: start=0, step=1, limit=4
    $region2: #{tpu_custom_call.1} parent=1 // loop_pre_header
      _
    $region3: #{tpu_custom_call.1} parent=1 // loop_header
      %s16 = sphi 0, %s20
      %p17 = scmp.ge.s32.totalorder %s16, 4
      %s26 = sphi 0, %s28
      %s29 = sphi 0, %s26
      %s30 = sphi 0, %s29
      %s46 = sphi 0, %s30
      %s50 = sphi 0, %s50
      %s52 = sphi 0, %s50
      %s53 = sphi 0, %s52
      %s67 = sphi 0, %s53
      %s71 = sphi 0, %s71
      %s73 = sphi 0, %s71
      %s74 = sphi 0, %s73
      %s88 = sphi 0, %s74
      %s92 = sphi 0, %s92
      %s94 = sphi 0, %s92
      %s95 = sphi 0, %s94
      %s109 = sphi 0, %s95
      %s113 = sphi 0, %s113
      %s115 = sphi 0, %s113
      %s116 = sphi 0, %s115
      %s130 = sphi 0, %s116
      %s134 = sphi 0, %s134
      %s136 = sphi 0, %s134
      %s137 = sphi 0, %s136
      %s151 = sphi 0, %s137
      %s155 = sphi 0, %s155
      %s157 = sphi 0, %s155
      %s158 = sphi 0, %s157
      %s172 = sphi 0, %s158
      %s178 = sphi 0, %s180
      %s181 = sphi 0, %s178
      %s182 = sphi 0, %s181
      %s198 = sphi 0, %s182
    $region4: #{tpu_custom_call.1} parent=1 // loop_header_branch
      %19 = sbr.rel (%p17) target = $region8
    $region5: #{tpu_custom_call.1} parent=1 // loop_body
      %s21 = ssub.s32 %s16, 1
      %s22 = ssub.s32 %s16, 2
      %s23 = sadd.s32 %s16, 1
      %s24 = ssub.s32 %s16, %s23
      %p25 = scmp.eq.s32.totalorder %s24, 0
      %s27 = sadd.s32 %s26, 1
      %s28 = scalar_select %p25, %s26, %s27
      %p31 = pneg %p25
      %p32 = scmp.eq.s32.totalorder %s16, 1
      %p33 = por %p31, %p32
      %p34 = scmp.ne.s32.totalorder %s26, %s29
      %p35 = scmp.eq.s32.totalorder %s16, 0
      %p36 = por %p34, %p35
      %p37 = scmp.ne.s32.totalorder %s26, %s29
      %p38 = scmp.eq.s32.totalorder %s21, 1
      %p39 = por %p37, %p38
      %p40 = scmp.ne.s32.totalorder %s29, %s30
      %p41 = scmp.eq.s32.totalorder %s21, 0
      %p42 = por %p40, %p41
      %p43 = scmp.ne.s32.totalorder %s29, %s30
      %p44 = scmp.eq.s32.totalorder %s22, 1
      %p45 = por %p43, %p44
      %p47 = scmp.ne.s32.totalorder %s30, %s46
      %p48 = scmp.eq.s32.totalorder %s22, 0
      %p49 = por %p47, %p48
      %s51 = sadd.s32 %s50, 1
      %p54 = scmp.eq.s32.totalorder %s16, 1
      %p55 = scmp.ne.s32.totalorder %s50, %s52
      %p56 = scmp.eq.s32.totalorder %s16, 0
      %p57 = por %p55, %p56
      %p58 = scmp.ne.s32.totalorder %s50, %s52
      %p59 = scmp.eq.s32.totalorder %s21, 1
      %p60 = por %p58, %p59
      %p61 = scmp.ne.s32.totalorder %s52, %s53
      %p62 = scmp.eq.s32.totalorder %s21, 0
      %p63 = por %p61, %p62
      %p64 = scmp.ne.s32.totalorder %s52, %s53
      %p65 = scmp.eq.s32.totalorder %s22, 1
      %p66 = por %p64, %p65
      %p68 = scmp.ne.s32.totalorder %s53, %s67
      %p69 = scmp.eq.s32.totalorder %s22, 0
      %p70 = por %p68, %p69
      %s72 = sadd.s32 %s71, 1
      %p75 = scmp.eq.s32.totalorder %s16, 1
      %p76 = scmp.ne.s32.totalorder %s71, %s73
      %p77 = scmp.eq.s32.totalorder %s16, 0
      %p78 = por %p76, %p77
      %p79 = scmp.ne.s32.totalorder %s71, %s73
      %p80 = scmp.eq.s32.totalorder %s21, 1
      %p81 = por %p79, %p80
      %p82 = scmp.ne.s32.totalorder %s73, %s74
      %p83 = scmp.eq.s32.totalorder %s21, 0
      %p84 = por %p82, %p83
      %p85 = scmp.ne.s32.totalorder %s73, %s74
      %p86 = scmp.eq.s32.totalorder %s22, 1
      %p87 = por %p85, %p86
      %p89 = scmp.ne.s32.totalorder %s74, %s88
      %p90 = scmp.eq.s32.totalorder %s22, 0
      %p91 = por %p89, %p90
      %s93 = sadd.s32 %s92, 1
      %p96 = scmp.eq.s32.totalorder %s16, 1
      %p97 = scmp.ne.s32.totalorder %s92, %s94
      %p98 = scmp.eq.s32.totalorder %s16, 0
      %p99 = por %p97, %p98
      %p100 = scmp.ne.s32.totalorder %s92, %s94
      %p101 = scmp.eq.s32.totalorder %s21, 1
      %p102 = por %p100, %p101
      %p103 = scmp.ne.s32.totalorder %s94, %s95
      %p104 = scmp.eq.s32.totalorder %s21, 0
      %p105 = por %p103, %p104
      %p106 = scmp.ne.s32.totalorder %s94, %s95
      %p107 = scmp.eq.s32.totalorder %s22, 1
      %p108 = por %p106, %p107
      %p110 = scmp.ne.s32.totalorder %s95, %s109
      %p111 = scmp.eq.s32.totalorder %s22, 0
      %p112 = por %p110, %p111
      %s114 = sadd.s32 %s113, 1
      %p117 = scmp.eq.s32.totalorder %s16, 1
      %p118 = scmp.ne.s32.totalorder %s113, %s115
      %p119 = scmp.eq.s32.totalorder %s16, 0
      %p120 = por %p118, %p119
      %p121 = scmp.ne.s32.totalorder %s113, %s115
      %p122 = scmp.eq.s32.totalorder %s21, 1
      %p123 = por %p121, %p122
      %p124 = scmp.ne.s32.totalorder %s115, %s116
      %p125 = scmp.eq.s32.totalorder %s21, 0
      %p126 = por %p124, %p125
      %p127 = scmp.ne.s32.totalorder %s115, %s116
      %p128 = scmp.eq.s32.totalorder %s22, 1
      %p129 = por %p127, %p128
      %p131 = scmp.ne.s32.totalorder %s116, %s130
      %p132 = scmp.eq.s32.totalorder %s22, 0
      %p133 = por %p131, %p132
      %s135 = sadd.s32 %s134, 1
      %p138 = scmp.eq.s32.totalorder %s16, 1
      %p139 = scmp.ne.s32.totalorder %s134, %s136
      %p140 = scmp.eq.s32.totalorder %s16, 0
      %p141 = por %p139, %p140
      %p142 = scmp.ne.s32.totalorder %s134, %s136
      %p143 = scmp.eq.s32.totalorder %s21, 1
      %p144 = por %p142, %p143
      %p145 = scmp.ne.s32.totalorder %s136, %s137
      %p146 = scmp.eq.s32.totalorder %s21, 0
      %p147 = por %p145, %p146
      %p148 = scmp.ne.s32.totalorder %s136, %s137
      %p149 = scmp.eq.s32.totalorder %s22, 1
      %p150 = por %p148, %p149
      %p152 = scmp.ne.s32.totalorder %s137, %s151
      %p153 = scmp.eq.s32.totalorder %s22, 0
      %p154 = por %p152, %p153
      %s156 = sadd.s32 %s155, 1
      %p159 = scmp.eq.s32.totalorder %s16, 1
      %p160 = scmp.ne.s32.totalorder %s155, %s157
      %p161 = scmp.eq.s32.totalorder %s16, 0
      %p162 = por %p160, %p161
      %p163 = scmp.ne.s32.totalorder %s155, %s157
      %p164 = scmp.eq.s32.totalorder %s21, 1
      %p165 = por %p163, %p164
      %p166 = scmp.ne.s32.totalorder %s157, %s158
      %p167 = scmp.eq.s32.totalorder %s21, 0
      %p168 = por %p166, %p167
      %p169 = scmp.ne.s32.totalorder %s157, %s158
      %p170 = scmp.eq.s32.totalorder %s22, 1
      %p171 = por %p169, %p170
      %p173 = scmp.ne.s32.totalorder %s158, %s172
      %p174 = scmp.eq.s32.totalorder %s22, 0
      %p175 = por %p173, %p174
      %s176 = ssub.s32 %s16, %s23
      %p177 = scmp.eq.s32.totalorder %s176, 0
      %s179 = sadd.s32 %s178, 1
      %s180 = scalar_select %p177, %s178, %s179
      %p183 = pneg %p177
      %p184 = scmp.eq.s32.totalorder %s16, 1
      %p185 = por %p183, %p184
      %p186 = scmp.ne.s32.totalorder %s178, %s181
      %p187 = scmp.eq.s32.totalorder %s16, 0
      %p188 = por %p186, %p187
      %p189 = scmp.ne.s32.totalorder %s178, %s181
      %p190 = scmp.eq.s32.totalorder %s21, 1
      %p191 = por %p189, %p190
      %p192 = scmp.ne.s32.totalorder %s181, %s182
      %p193 = scmp.eq.s32.totalorder %s21, 0
      %p194 = por %p192, %p193
      %p195 = scmp.ne.s32.totalorder %s181, %s182
      %p196 = scmp.eq.s32.totalorder %s22, 1
      %p197 = por %p195, %p196
      %p199 = scmp.ne.s32.totalorder %s182, %s198
      %p200 = scmp.eq.s32.totalorder %s22, 0
      %p201 = por %p199, %p200
      %p202 = scmp.le.s32.totalorder 1, %s16
      %p203 = scmp.lt.s32.totalorder %s16, 3
      %p204 = pnand %p202, %p203
      %p205 = pneg %p204
      // Predicated region
      $region9: #{tpu_custom_call.1} parent=5 // pred_check
        _
      $region10: #{tpu_custom_call.1} parent=5 // pred_check_branch
        %207 = sbr.rel (%p204) target = $region12
      $region11: #{tpu_custom_call.1} parent=5 // pred_region
        %s208 = ssub.s32 %s16, 1
        // Predicated region
        $region13: #{tpu_custom_call.1} parent=11 // pred_check
          %p209 = pneg %p63
        $region14: #{tpu_custom_call.1} parent=11 // pred_check_branch
          %211 = sbr.rel (%p209) target = $region16
        $region15: #{tpu_custom_call.1} parent=11 // pred_region
          _
        $region16: #{tpu_custom_call.1} parent=11 // pred_fallthru
          _
        // Predicated region
        $region17: #{tpu_custom_call.1} parent=11 // pred_check
          %p212 = pneg %p84
        $region18: #{tpu_custom_call.1} parent=11 // pred_check_branch
          %214 = sbr.rel (%p212) target = $region20
        $region19: #{tpu_custom_call.1} parent=11 // pred_region
          _
        $region20: #{tpu_custom_call.1} parent=11 // pred_fallthru
          _
        // Predicated region
        $region21: #{tpu_custom_call.1} parent=11 // pred_check
          %p215 = pneg %p105
        $region22: #{tpu_custom_call.1} parent=11 // pred_check_branch
          %217 = sbr.rel (%p215) target = $region24
        $region23: #{tpu_custom_call.1} parent=11 // pred_region
          _
        $region24: #{tpu_custom_call.1} parent=11 // pred_fallthru
          _
        // Predicated region
        $region25: #{tpu_custom_call.1} parent=11 // pred_check
          %p218 = pneg %p126
        $region26: #{tpu_custom_call.1} parent=11 // pred_check_branch
          %220 = sbr.rel (%p218) target = $region28
        $region27: #{tpu_custom_call.1} parent=11 // pred_region
          _
        $region28: #{tpu_custom_call.1} parent=11 // pred_fallthru
          _
        // Predicated region
        $region29: #{tpu_custom_call.1} parent=11 // pred_check
          %p221 = pneg %p147
        $region30: #{tpu_custom_call.1} parent=11 // pred_check_branch
          %223 = sbr.rel (%p221) target = $region32
        $region31: #{tpu_custom_call.1} parent=11 // pred_region
          _
        $region32: #{tpu_custom_call.1} parent=11 // pred_fallthru
          _
        // Predicated region
        $region33: #{tpu_custom_call.1} parent=11 // pred_check
          %p224 = pneg %p168
        $region34: #{tpu_custom_call.1} parent=11 // pred_check_branch
          %226 = sbr.rel (%p224) target = $region36
        $region35: #{tpu_custom_call.1} parent=11 // pred_region
          _
        $region36: #{tpu_custom_call.1} parent=11 // pred_fallthru
          _
      $region12: #{tpu_custom_call.1} parent=5 // pred_fallthru
        _
      %p227 = scmp.lt.s32.totalorder %s16, 2
      // Predicated region
      $region37: #{tpu_custom_call.1} parent=5 // pred_check
        %p228 = pneg %p227
      $region38: #{tpu_custom_call.1} parent=5 // pred_check_branch
        %230 = sbr.rel (%p228) target = $region40
      $region39: #{tpu_custom_call.1} parent=5 // pred_region
        // Predicated region
        $region41: #{tpu_custom_call.1} parent=39 // pred_check
          %p231 = pneg %p36
        $region42: #{tpu_custom_call.1} parent=39 // pred_check_branch
          %233 = sbr.rel (%p231) target = $region44
        $region43: #{tpu_custom_call.1} parent=39 // pred_region
          %p234 = scmp.lt.s32.totalorder %s16, 1
          %s235 = scalar_select %p234, %s16, 1
          %s236 = smul.addr %s235, 8
          %s237 = scalar_lea.vmem %s0, %s236
        $region44: #{tpu_custom_call.1} parent=39 // pred_fallthru
          _
      $region40: #{tpu_custom_call.1} parent=5 // pred_fallthru
        _
      %p238 = scmp.le.s32.totalorder 1, %s16
      %p239 = scmp.lt.s32.totalorder %s16, 3
      %p240 = pnand %p238, %p239
      %p241 = pneg %p240
      // Predicated region
      $region45: #{tpu_custom_call.1} parent=5 // pred_check
        _
      $region46: #{tpu_custom_call.1} parent=5 // pred_check_branch
        %243 = sbr.rel (%p240) target = $region48
      $region47: #{tpu_custom_call.1} parent=5 // pred_region
        %s244 = ssub.s32 %s16, 1
        %p245 = scmp.lt.s32.totalorder %s21, 1
        %s246 = scalar_select %p245, %s21, 1
        %s247 = smul.addr %s246, 8
        %s248 = scalar_lea.vmem %s0, %s247
        %p249 = pneg %p42
        %p250 = pneg %p39
        %p251 = pneg %p63
        %p252 = pneg %p60
        %p253 = pneg %p84
        %p254 = pneg %p81
        %p255 = pneg %p105
        %p256 = pneg %p102
        %p257 = pneg %p126
        %p258 = pneg %p123
        %p259 = pneg %p147
        %p260 = pneg %p144
        %p261 = pneg %p168
        %p262 = pneg %p165
        %p263 = pneg %p194
        %p264 = pneg %p191
        %s265 = sand.u32 %s181, 1
        %s266 = scalar_lea.sflag [#allocation3], %s265
        %s267 = sand.u32 %s181, 1
        %s268 = smul.addr %s267, 8
        %s269 = scalar_lea.vmem [#allocation2], %s268
        %p270 = scmp.lt.s32.totalorder %s21, 1
        %s271 = scalar_select %p270, %s21, 1
        %s272 = smul.addr %s271, 8
        %s273 = scalar_lea.vmem %s0, %s272
        %v274 = vld [vmem:[%s2] sm:$0x1]
        %v275 = vld [vmem:[%s3] sm:$0x1]
        %v276 = vld [vmem:[%s4] sm:$0x1]
        %v277 = vld [vmem:[%s6] sm:$0x1]
        %v278 = vld [vmem:[%s273] sm:$0xff]
        %v279 = vld [vmem:[%s1] sm:$0xff]
        %v280 = vld [vmem:[%s1 + $0x8] sm:$0xff]
        %v282 = vlaneseq
        %v283 = vshrl.u32 %v282, 7
        %v284 = vsub.s32 0, %v283
        %v285 = vrot.slane %v274, %v284
        %vm287 = vcmask 130048
        %v289 = vsel %vm287, %v278, 0
        %291 = vmatprep.subr.mxu0 0.0
        %292 = vmatpush1.msra.mxu0 %v279
        %293 = vmatprep.subr.mxu0 0.0
        %294 = vmatpush1.msra.mxu0 %v280
        %295 = vmatprep.subr.mxu0 0.0
        %296 = vmatpush1.msra.mxu0 0.0
        %297 = vmatprep.subr.mxu0 0.0
        %298 = vmatpush1.msra.mxu0 0.0
        %299 = vmatprep.subr.mxu0 0.0
        %300 = vmatpush1.msra.mxu0 0.0
        %301 = vmatprep.subr.mxu0 0.0
        %302 = vmatpush1.msra.mxu0 0.0
        %303 = vmatprep.subr.mxu0 0.0
        %304 = vmatpush1.msra.mxu0 0.0
        %305 = vmatprep.subr.mxu0 0.0
        %306 = vmatpush1.msra.mxu0 0.0
        %307 = vmatprep.subr.mxu0 0.0
        %308 = vmatpush1.msra.mxu0 0.0
        %309 = vmatprep.subr.mxu0 0.0
        %310 = vmatpush1.msra.mxu0 0.0
        %311 = vmatprep.subr.mxu0 0.0
        %312 = vmatpush1.msra.mxu0 0.0
        %313 = vmatprep.subr.mxu0 0.0
        %314 = vmatpush1.msra.mxu0 0.0
        %315 = vmatprep.subr.mxu0 0.0
        %316 = vmatpush1.msra.mxu0 0.0
        %317 = vmatprep.subr.mxu0 0.0
        %318 = vmatpush1.msra.mxu0 0.0
        %319 = vmatprep.subr.mxu0 0.0
        %320 = vmatpush1.msra.mxu0 0.0
        %321 = vmatprep.subr.mxu0 0.0
        %322 = vmatpush1.msra.mxu0 0.0
        %323 = vmatprep.subr.mxu0 0.0
        %324 = vmatpush1.msra.mxu0 0.0
        %325 = vmatprep.subr.mxu0 0.0
        %326 = vmatpush1.msra.mxu0 0.0
        %327 = vmatprep.subr.mxu0 0.0
        %328 = vmatpush1.msra.mxu0 0.0
        %329 = vmatprep.subr.mxu0 0.0
        %330 = vmatpush1.msra.mxu0 0.0
        %331 = vmatprep.subr.mxu0 0.0
        %332 = vmatpush1.msra.mxu0 0.0
        %333 = vmatprep.subr.mxu0 0.0
        %334 = vmatpush1.msra.mxu0 0.0
        %335 = vmatprep.subr.mxu0 0.0
        %336 = vmatpush1.msra.mxu0 0.0
        %337 = vmatprep.subr.mxu0 0.0
        %338 = vmatpush1.msra.mxu0 0.0
        %339 = vmatprep.subr.mxu0 0.0
        %340 = vmatpush1.msra.mxu0 0.0
        %341 = vmatprep.subr.mxu0 0.0
        %342 = vmatpush1.msra.mxu0 0.0
        %343 = vmatprep.subr.mxu0 0.0
        %344 = vmatpush1.msra.mxu0 0.0
        %345 = vmatprep.subr.mxu0 0.0
        %346 = vmatpush1.msra.mxu0 0.0
        %347 = vmatprep.subr.mxu0 0.0
        %348 = vmatpush1.msra.mxu0 0.0
        %349 = vmatprep.subr.mxu0 0.0
        %350 = vmatpush1.msra.mxu0 0.0
        %351 = vmatprep.subr.mxu0 0.0
        %352 = vmatpush1.msra.mxu0 0.0
        %353 = vmatprep.subr.mxu0 0.0
        %354 = vmatpush1.msra.mxu0 0.0
        %355 = vmatprep.mubr.f32.mxu0 0.0
        %356 = vmatmul.mubr.f32.gmra.mrb[0].mxu0 %v289
        %v357 = vpop.f32.mrb[0].mxu0
        %v358 = vadd.f32 %v285, %v357
        %v359 = vpop.f32.mrb[0].mxu0
        %360 = vdwg.mxu0
        %361 = vadd.xlane.f32.xlu0 %v358
        %v362 = vpop.xlane.xlu0 %361
        %v363 = vmul.f32 %v362, 0.03125
        %v364 = vmul.f32 %v358, %v358
        %365 = vadd.xlane.f32.xlu0 %v364
        %v366 = vpop.xlane.xlu0 %365
        %v367 = vmul.f32 %v366, 0.03125
        %v368 = vmul.f32 %v363, %v363
        %v369 = vsub.f32 %v367, %v368
        %v370 = vmax.f32 %v369, 0.0
        %v371 = vsub.f32 %v358, %v363
        %v372 = vadd.f32 %v370, 1e-05
        %v373 = vrsqrt.pop %v372
        %v374 = vmul.f32 %v371, %v373
        %v376 = vlaneseq
        %v377 = vshrl.u32 %v376, 7
        %v378 = vsub.s32 0, %v377
        %v379 = vrot.slane %v275, %v378
        %v381 = vmul.f32 %v374, %v379
        %v383 = vlaneseq
        %v384 = vshrl.u32 %v383, 7
        %v385 = vsub.s32 0, %v384
        %v386 = vrot.slane %v276, %v385
        %v388 = vadd.f32 %v381, %v386
        %v389 = vld [vmem:[%s5] sm:$0xff]
        %v390 = vld [vmem:[%s5 + $0x8] sm:$0xff]
        %v391 = vld [vmem:[%s5 + $0x10] sm:$0xff]
        %v392 = vld [vmem:[%s5 + $0x18] sm:$0xff]
        %v393 = vld [vmem:[%s5 + $0x20] sm:$0xff]
        %v394 = vld [vmem:[%s5 + $0x28] sm:$0xff]
        %v395 = vld [vmem:[%s5 + $0x30] sm:$0xff]
        %v396 = vld [vmem:[%s5 + $0x38] sm:$0xff]
        %v397 = vld [vmem:[%s5 + $0x40] sm:$0xff]
        %v398 = vld [vmem:[%s5 + $0x48] sm:$0xff]
        %v399 = vld [vmem:[%s5 + $0x50] sm:$0xff]
        %v400 = vld [vmem:[%s5 + $0x58] sm:$0xff]
        %v401 = vld [vmem:[%s5 + $0x60] sm:$0xff]
        %v402 = vld [vmem:[%s5 + $0x68] sm:$0xff]
        %v403 = vld [vmem:[%s5 + $0x70] sm:$0xff]
        %v404 = vld [vmem:[%s5 + $0x78] sm:$0xff]
        %v406 = vlaneseq
        %v407 = vshrl.u32 %v406, 7
        %v408 = vsub.s32 0, %v407
        %v409 = vrot.slane %v277, %v408
        %411 = vmatprep.subr.mxu0 0.0
        %412 = vmatpush1.msra.mxu0 %v389
        %413 = vmatprep.subr.mxu0 0.0
        %414 = vmatpush1.msra.mxu0 %v390
        %415 = vmatprep.subr.mxu0 0.0
        %416 = vmatpush1.msra.mxu0 %v391
        %417 = vmatprep.subr.mxu0 0.0
        %418 = vmatpush1.msra.mxu0 %v392
        %419 = vmatprep.subr.mxu0 0.0
        %420 = vmatpush1.msra.mxu0 %v393
        %421 = vmatprep.subr.mxu0 0.0
        %422 = vmatpush1.msra.mxu0 %v394
        %423 = vmatprep.subr.mxu0 0.0
        %424 = vmatpush1.msra.mxu0 %v395
        %425 = vmatprep.subr.mxu0 0.0
        %426 = vmatpush1.msra.mxu0 %v396
        %427 = vmatprep.subr.mxu0 0.0
        %428 = vmatpush1.msra.mxu0 %v397
        %429 = vmatprep.subr.mxu0 0.0
        %430 = vmatpush1.msra.mxu0 %v398
        %431 = vmatprep.subr.mxu0 0.0
        %432 = vmatpush1.msra.mxu0 %v399
        %433 = vmatprep.subr.mxu0 0.0
        %434 = vmatpush1.msra.mxu0 %v400
        %435 = vmatprep.subr.mxu0 0.0
        %436 = vmatpush1.msra.mxu0 %v401
        %437 = vmatprep.subr.mxu0 0.0
        %438 = vmatpush1.msra.mxu0 %v402
        %439 = vmatprep.subr.mxu0 0.0
        %440 = vmatpush1.msra.mxu0 %v403
        %441 = vmatprep.subr.mxu0 0.0
        %442 = vmatpush1.msra.mxu0 %v404
        %443 = vmatprep.subr.mxu0 0.0
        %444 = vmatpush1.msra.mxu0 0.0
        %445 = vmatprep.subr.mxu0 0.0
        %446 = vmatpush1.msra.mxu0 0.0
        %447 = vmatprep.subr.mxu0 0.0
        %448 = vmatpush1.msra.mxu0 0.0
        %449 = vmatprep.subr.mxu0 0.0
        %450 = vmatpush1.msra.mxu0 0.0
        %451 = vmatprep.subr.mxu0 0.0
        %452 = vmatpush1.msra.mxu0 0.0
        %453 = vmatprep.subr.mxu0 0.0
        %454 = vmatpush1.msra.mxu0 0.0
        %455 = vmatprep.subr.mxu0 0.0
        %456 = vmatpush1.msra.mxu0 0.0
        %457 = vmatprep.subr.mxu0 0.0
        %458 = vmatpush1.msra.mxu0 0.0
        %459 = vmatprep.subr.mxu0 0.0
        %460 = vmatpush1.msra.mxu0 0.0
        %461 = vmatprep.subr.mxu0 0.0
        %462 = vmatpush1.msra.mxu0 0.0
        %463 = vmatprep.subr.mxu0 0.0
        %464 = vmatpush1.msra.mxu0 0.0
        %465 = vmatprep.subr.mxu0 0.0
        %466 = vmatpush1.msra.mxu0 0.0
        %467 = vmatprep.subr.mxu0 0.0
        %468 = vmatpush1.msra.mxu0 0.0
        %469 = vmatprep.subr.mxu0 0.0
        %470 = vmatpush1.msra.mxu0 0.0
        %471 = vmatprep.subr.mxu0 0.0
        %472 = vmatpush1.msra.mxu0 0.0
        %473 = vmatprep.subr.mxu0 0.0
        %474 = vmatpush1.msra.mxu0 0.0
        %475 = vmatprep.mubr.f32.mxu0 0.0
        %476 = vmatmul.mubr.f32.gmra.mrb[0].mxu0 %v388
        %v477 = vpop.f32.mrb[0].mxu0
        %v478 = vadd.f32 %v409, %v477
        %v479 = vpop.f32.mrb[0].mxu0
        %480 = vdwg.mxu0
        %v481 = vxor.u32 %v478, 2147483648
        %v482 = vmul.f32 %v481, 1.442695
        %v483 = vpow.pop %v482
        %v484 = vadd.f32 %v483, 1.0
        %v485 = vrcp.pop %v484
        %v486 = vmul.f32 1.0, %v485
        %v487 = vmul.f32 %v478, %v486
        %vm488 = vcmask 523264
        %489 = vst.msk [vmem:[%s269] sm:$0xff] %vm488, %v487
        %s490 = sand.u32 %s181, 1
        %s491 = scalar_lea.sflag [#allocation3], %s490
        %s492 = sand.u32 %s181, 1
        %s493 = smul.addr %s492, 8
        %s494 = scalar_lea.vmem [#allocation2], %s493
        // Predicated region
        $region49: #{tpu_custom_call.1} parent=47 // pred_check
          %p495 = pneg %p191
        $region50: #{tpu_custom_call.1} parent=47 // pred_check_branch
          %497 = sbr.rel (%p495) target = $region52
        $region51: #{tpu_custom_call.1} parent=47 // pred_region
          %s499 = ssub.s32 128, 128
          %500 = vsyncadd %s491, %s499
          %s501 = smul.addr %s21, 128
          %s502 = scalar_lea.hbm %s7, %s501
          %s504 = sshll.u32 %s494, 4
          %s505 = int_to_ptr.vmem [resolvable:$true] %s504
          %507 = dma.vmem_to_hbm [thread:$0]  %s505, 128, %s502, %s491
        $region52: #{tpu_custom_call.1} parent=47 // pred_fallthru
          _
      $region48: #{tpu_custom_call.1} parent=5 // pred_fallthru
        _
      %p508 = scmp.le.s32.totalorder 2, %s16
      // Predicated region
      $region53: #{tpu_custom_call.1} parent=5 // pred_check
        %p509 = pneg %p508
      $region54: #{tpu_custom_call.1} parent=5 // pred_check_branch
        %511 = sbr.rel (%p509) target = $region56
      $region55: #{tpu_custom_call.1} parent=5 // pred_region
        %s512 = ssub.s32 %s16, 2
        // Predicated region
        $region57: #{tpu_custom_call.1} parent=55 // pred_check
          %p513 = pneg %p197
        $region58: #{tpu_custom_call.1} parent=55 // pred_check_branch
          %515 = sbr.rel (%p513) target = $region60
        $region59: #{tpu_custom_call.1} parent=55 // pred_region
          %s516 = sand.u32 %s182, 1
          %s517 = scalar_lea.sflag [#allocation3], %s516
          %s518 = sand.u32 %s182, 1
          %s519 = smul.addr %s518, 8
          %s520 = scalar_lea.vmem [#allocation2], %s519
          %521 = dma.done %s517, 128
        $region60: #{tpu_custom_call.1} parent=55 // pred_fallthru
          _
      $region56: #{tpu_custom_call.1} parent=5 // pred_fallthru
        _
    $region6: #{tpu_custom_call.1} parent=1 // loop_footer
      %s20 = sadd.s32 1, %s16
    $region7: #{tpu_custom_call.1} parent=1 // loop_footer_branch
      %15 = sbr.rel target = $region3
    $region8: #{tpu_custom_call.1} parent=1 // loop_exit
      _
    %522 = vsyncpa [#allocation3], 1
    %s523 = scalar_lea.sflag [#allocation3], 1
    %524 = vsyncpa %s523, 1

</llo_original>
